<compile_context>
chip_gen: v7x
topology: tpu7x:2x2x1
jax: 0.10.0
libtpu: 0.0.40
codegen_flags: <defaults>
</compile_context>

<pallas_src>
import functools
import math

import jax
import jax.numpy as jnp
from jax import lax
from jax.experimental import pallas as pl
from jax.experimental.pallas import tpu as pltpu


# ----------------------------------------------------------------------------- kernel
def fourier_res_kernel(x_ref, pos_ref, m_ref, bias_ref, o_ref, *, seq, hidden):
    """Single-invocation kernel over the whole lane-dense (B, H*S) slab.

    Layout: lane index l = h*S + s  (h-major flattening of the (S, H) tile).

    x_ref, pos_ref, o_ref : (B, H*S)    f32   (H*S multiple of 128 -> unmasked stores)
    m_ref                 : (H*S, H*S)  bf16  gamma-folded Kronecker Fourier operator
    bias_ref              : (1, H*S)    f32   beta-folded bias row (beta_tiled @ M)
    """
    xp = x_ref[...] + pos_ref[...]                                   # (B, HS) f32

    nsteps = hidden.bit_length() - 1                                  # log2(H)
    inv_h = 1.0 / hidden

    # Per-(b, s) mean over h.  In this h-major flattening, the h-group of lane
    # l is the stride-S coset {l mod S + S*j}, closed under cyclic shifts by
    # multiples of S, so log2(H) roll-and-add steps yield the group sum
    # broadcast back to every member.  No P operator, no in-kernel reshape;
    # the XLU slot is otherwise idle so these rolls are ~free.
    acc = xp
    for k in range(nsteps):
        acc = acc + pltpu.roll(acc, shift=seq * (1 << k), axis=1)
    mean = acc * inv_h

    d = xp - mean
    # Two-pass variance (mean of d^2): no E[x^2] - mean^2 cancellation risk,
    # exact f32 VPU math for the LayerNorm statistics.
    acc = d * d
    for k in range(nsteps):
        acc = acc + pltpu.roll(acc, shift=seq * (1 << k), axis=1)
    var = acc * inv_h

    yn = d * lax.rsqrt(var + 1e-5)            # gamma/beta folded into M'/bias_row

    # 2-D Fourier mixing as ONE lane-dense matmul (row-major vec identity on
    # the transposed tile):  vec_T(Re(F_S Y F_H)) = vec_T(Y) @ M_T,
    #   M_T = kron(C_H, C_S) - kron(S_H, S_S),   M' = diag(gamma_tiled) @ M_T.
    # bf16 MXU inputs, f32 accumulation.
    yf = jnp.dot(yn.astype(m_ref.dtype), m_ref[...],
                 preferred_element_type=jnp.float32)                 # (B, HS) f32

    # Residual connection + folded beta term (dropout = identity at eval time).
    o_ref[...] = (xp + yf + bias_ref[...]).astype(o_ref.dtype)


# ----------------------------------------------------------------------------- operators
def _dft_mats(n):
    k = jnp.arange(n, dtype=jnp.float32)
    ang = 2.0 * math.pi * (k[:, None] * k[None, :]) / n
    return jnp.cos(ang), jnp.sin(ang)


def build_fourier_operators(S, H, gamma, beta, mxu_dtype=jnp.bfloat16):
    """Build the (hoisted, call-path-free) operators exactly once.

    Returns:
      m_folded : (H*S, H*S) bf16.  Real 2-D DFT operator for the h-major
                 flattening (index h*S + s), with LayerNorm gamma folded in:
                     M_T = kron(C_H, C_S) - kron(S_H, S_S)
                     M'  = diag(repeat(gamma, S)) @ M_T
      bias_row : (1, H*S) f32.  Folded beta term: repeat(beta, S) @ M_T.
    """
    SH = S * H
    # The segmented-roll reduction needs H to be a power of two.
    assert H & (H - 1) == 0, "hidden_size must be a power of two for the roll reduction"
    # VMEM guard (v7x has 64 MiB physical / 32 MiB scoped-default VMEM): the
    # bf16 kron operator is 2*(S*H)^2 bytes.  Tile the Fourier matmul over K/N
    # (or use the factored C_s/S_s, C_h/S_h form) before S*H grows past ~4K.
    assert 2 * SH * SH <= 32 * 1024 * 1024, "Kron Fourier operator too large for whole-array VMEM"

    cs, ss = _dft_mats(S)
    ch, sh = _dft_mats(H)
    m = jnp.kron(ch, cs) - jnp.kron(sh, ss)                   # (SH, SH) f32
    g_t = jnp.repeat(gamma.astype(jnp.float32), S)            # g_t[h*S+s] = gamma[h]
    b_t = jnp.repeat(beta.astype(jnp.float32), S)             # b_t[h*S+s] = beta[h]
    m_folded = (g_t[:, None] * m).astype(mxu_dtype)           # diag(gamma) @ M  (bf16)
    bias_row = jnp.dot(b_t[None, :], m)                       # (1, SH) f32 (exact)
    return m_folded, bias_row


# ----------------------------------------------------------------------------- wrapper
@jax.jit
def encoder_forward(x, pos, fourier_op, bias_row):
    """x, pos: (B, S, H) f32.  Returns (B, S, H) f32."""
    B, S, H = x.shape
    HS = H * S
    assert H & (H - 1) == 0
    # Layout plumbing only: h-major lane-dense (B, H*S) slab; HS is a multiple
    # of 128 (unmasked vst) and the LN h-groups become stride-S lane cosets.
    x2 = x.transpose(0, 2, 1).reshape(B, HS)
    pos2 = pos.transpose(0, 2, 1).reshape(B, HS)

    kernel = functools.partial(fourier_res_kernel, seq=S, hidden=H)
    bytes_accessed = (x2.size + pos2.size + bias_row.size + B * HS) * 4 \
        + fourier_op.size * 2
    out_flat = pl.pallas_call(
        kernel,
        out_shape=jax.ShapeDtypeStruct((B, HS), x.dtype),
        # No grid: whole problem in one invocation, whole-array VMEM blocks
        # (removes per-grid-step overhead, which dominates at these shapes).
        in_specs=[pl.BlockSpec(memory_space=pltpu.MemorySpace.VMEM)] * 4,
        out_specs=pl.BlockSpec(memory_space=pltpu.MemorySpace.VMEM),
        cost_estimate=pl.CostEstimate(
            flops=2 * B * HS * HS + 12 * B * HS,
            transcendentals=B * HS,
            bytes_accessed=bytes_accessed),
    )(x2, pos2, fourier_op, bias_row)
    # Back to (B, S, H).
    return out_flat.reshape(B, H, S).transpose(0, 2, 1)


# ----------------------------------------------------------------------------- reference
def encoder_reference(x, pos, gamma, beta):
    xp = x + pos
    mean = jnp.mean(xp, axis=-1, keepdims=True)
    var = jnp.mean((xp - mean) ** 2, axis=-1, keepdims=True)
    y = (xp - mean) / jnp.sqrt(var + 1e-5) * gamma + beta
    yf = jnp.real(jnp.fft.fft(jnp.fft.fft(y, axis=-1), axis=-2))
    return xp + yf


# ----------------------------------------------------------------------------- main
if __name__ == "__main__":
    # Shapes consistent with Encoder(hidden_size=32, filter_size=64, head_size=4);
    # filter_size / head_size do not affect this forward pass.
    B, S, H = 2, 8, 32

    key = jax.random.PRNGKey(0)
    kx, kp = jax.random.split(key)
    x = jax.random.normal(kx, (B, S, H), dtype=jnp.float32)
    pos = jax.random.normal(kp, (B, S, H), dtype=jnp.float32)

    # Deterministic, non-trivial LayerNorm params (exercise the gamma/beta fold).
    gamma = 1.0 + 0.05 * jnp.arange(H, dtype=jnp.float32) / H
    beta = 0.01 * jnp.arange(H, dtype=jnp.float32)

    # Operators are built ONCE, outside the call path (gamma/beta folded in).
    fourier_op, bias_row = build_fourier_operators(S, H, gamma, beta)

    out = encoder_forward(x, pos, fourier_op, bias_row)
    out = jax.block_until_ready(out)

    ref = encoder_reference(x, pos, gamma, beta)
    assert out.shape == (B, S, H)

    # Tolerance sized for the bf16 MXU operator over a K = S*H = 256 reduction
    # (f32 accumulation; LN statistics and beta term are exact f32).
    err = jnp.max(jnp.abs(out - ref))
    scale = jnp.maximum(jnp.max(jnp.abs(ref)), 1.0)
    assert err / scale < 2e-2, f"mismatch vs reference: rel err {float(err / scale)}"

    print("KERNEL_OK")
</pallas_src>

<mosaic_0001>
module attributes {stable_mosaic.version = 11 : i64} {
  func.func @fourier_res_kernel(%arg0: memref<2x256xf32, #tpu.memory_space<vmem>>, %arg1: memref<2x256xf32, #tpu.memory_space<vmem>>, %arg2: memref<256x256xbf16, #tpu.memory_space<vmem>>, %arg3: memref<1x256xf32, #tpu.memory_space<vmem>>, %arg4: memref<2x256xf32, #tpu.memory_space<vmem>>) attributes {dimension_semantics = [], scalar_prefetch = 0 : i64, scratch_operands = 0 : i64, tpu.core_type = #tpu.core_type<tc>} {
    %c0 = arith.constant 0 : index
    %c0_0 = arith.constant 0 : index
    %0 = vector.load %arg0[%c0, %c0_0] : memref<2x256xf32, #tpu.memory_space<vmem>>, vector<2x256xf32>
    %c0_1 = arith.constant 0 : index
    %c0_2 = arith.constant 0 : index
    %1 = vector.load %arg1[%c0_1, %c0_2] : memref<2x256xf32, #tpu.memory_space<vmem>>, vector<2x256xf32>
    %2 = arith.addf %0, %1 : vector<2x256xf32>
    %c8_i32 = arith.constant 8 : i32
    %3 = tpu.dynamic_rotate %2 by %c8_i32 dim 1 : vector<2x256xf32>, i32 -> vector<2x256xf32>
    %4 = arith.addf %2, %3 : vector<2x256xf32>
    %c16_i32 = arith.constant 16 : i32
    %5 = tpu.dynamic_rotate %4 by %c16_i32 dim 1 : vector<2x256xf32>, i32 -> vector<2x256xf32>
    %6 = arith.addf %4, %5 : vector<2x256xf32>
    %c32_i32 = arith.constant 32 : i32
    %7 = tpu.dynamic_rotate %6 by %c32_i32 dim 1 : vector<2x256xf32>, i32 -> vector<2x256xf32>
    %8 = arith.addf %6, %7 : vector<2x256xf32>
    %c64_i32 = arith.constant 64 : i32
    %9 = tpu.dynamic_rotate %8 by %c64_i32 dim 1 : vector<2x256xf32>, i32 -> vector<2x256xf32>
    %10 = arith.addf %8, %9 : vector<2x256xf32>
    %c128_i32 = arith.constant 128 : i32
    %11 = tpu.dynamic_rotate %10 by %c128_i32 dim 1 : vector<2x256xf32>, i32 -> vector<2x256xf32>
    %12 = arith.addf %10, %11 : vector<2x256xf32>
    %cst = arith.constant 3.125000e-02 : f32
    %13 = vector.broadcast %cst : f32 to vector<2x256xf32>
    %14 = arith.mulf %12, %13 : vector<2x256xf32>
    %15 = arith.subf %2, %14 : vector<2x256xf32>
    %16 = arith.mulf %15, %15 : vector<2x256xf32>
    %c8_i32_3 = arith.constant 8 : i32
    %17 = tpu.dynamic_rotate %16 by %c8_i32_3 dim 1 : vector<2x256xf32>, i32 -> vector<2x256xf32>
    %18 = arith.addf %16, %17 : vector<2x256xf32>
    %c16_i32_4 = arith.constant 16 : i32
    %19 = tpu.dynamic_rotate %18 by %c16_i32_4 dim 1 : vector<2x256xf32>, i32 -> vector<2x256xf32>
    %20 = arith.addf %18, %19 : vector<2x256xf32>
    %c32_i32_5 = arith.constant 32 : i32
    %21 = tpu.dynamic_rotate %20 by %c32_i32_5 dim 1 : vector<2x256xf32>, i32 -> vector<2x256xf32>
    %22 = arith.addf %20, %21 : vector<2x256xf32>
    %c64_i32_6 = arith.constant 64 : i32
    %23 = tpu.dynamic_rotate %22 by %c64_i32_6 dim 1 : vector<2x256xf32>, i32 -> vector<2x256xf32>
    %24 = arith.addf %22, %23 : vector<2x256xf32>
    %c128_i32_7 = arith.constant 128 : i32
    %25 = tpu.dynamic_rotate %24 by %c128_i32_7 dim 1 : vector<2x256xf32>, i32 -> vector<2x256xf32>
    %26 = arith.addf %24, %25 : vector<2x256xf32>
    %cst_8 = arith.constant 3.125000e-02 : f32
    %27 = vector.broadcast %cst_8 : f32 to vector<2x256xf32>
    %28 = arith.mulf %26, %27 : vector<2x256xf32>
    %cst_9 = arith.constant 9.99999974E-6 : f32
    %29 = vector.broadcast %cst_9 : f32 to vector<2x256xf32>
    %30 = arith.addf %28, %29 : vector<2x256xf32>
    %31 = math.rsqrt %30 : vector<2x256xf32>
    %32 = arith.mulf %15, %31 : vector<2x256xf32>
    %33 = arith.truncf %32 : vector<2x256xf32> to vector<2x256xbf16>
    %c0_10 = arith.constant 0 : index
    %c0_11 = arith.constant 0 : index
    %34 = vector.load %arg2[%c0_10, %c0_11] : memref<256x256xbf16, #tpu.memory_space<vmem>>, vector<256x256xbf16>
    %cst_12 = arith.constant dense<0.000000e+00> : vector<2x256xf32>
    %35 = tpu.matmul %33, %34, %cst_12 {dimension_numbers = #tpu.dot_dimension_numbers<[1], [0], [0], [1], [0, 0, 1, 1], [], []>} : vector<2x256xbf16>, vector<256x256xbf16>, vector<2x256xf32> -> vector<2x256xf32>
    %36 = arith.addf %2, %35 : vector<2x256xf32>
    %c0_13 = arith.constant 0 : index
    %c0_14 = arith.constant 0 : index
    %37 = vector.load %arg3[%c0_13, %c0_14] : memref<1x256xf32, #tpu.memory_space<vmem>>, vector<1x256xf32>
    %38 = vector.broadcast %37 : vector<1x256xf32> to vector<2x256xf32>
    %39 = arith.addf %36, %38 : vector<2x256xf32>
    %c0_15 = arith.constant 0 : index
    %c0_16 = arith.constant 0 : index
    %40 = vector.load %arg4[%c0_15, %c0_16] : memref<2x256xf32, #tpu.memory_space<vmem>>, vector<2x256xf32>
    tpu.vector_store %arg4[%c0_15, %c0_16], %39 {strides = array<i32>} : memref<2x256xf32, #tpu.memory_space<vmem>>, vector<2x256xf32>,
    return
  }
}

</mosaic_0001>

<llo_original>
// kernel: encoder_forward.1
$region0: #{encoder_forward.1}
  #allocation0 [shape = 'u32[]', space=smem, size = 0x4, offset = 0x4, fixed_abs, tag = 'smem constant byte address 0x4 - core index']
  #allocation1 [shape = 'u32[144,128]{1,0:T(1,128)}', space=vmem, size = 0x12000, scoped, tag = 'internal scratch']
  %s0 = inlined_call_operand.vmem [shape: f32[2,256], index: 0, kind: input, shape index: {}]
  %s1 = inlined_call_operand.vmem [shape: f32[2,256], index: 1, kind: input, shape index: {}]
  %s2 = inlined_call_operand.vmem [shape: bf16[256,256], index: 2, kind: input, shape index: {}]
  %s3 = inlined_call_operand.vmem [shape: f32[1,256], index: 3, kind: input, shape index: {}]
  %s4 = inlined_call_operand.vmem [shape: f32[2,256], index: 4, kind: output, shape index: {}]
  %s5 = sld [smem:[#allocation0]]
  $region26: #{encoder_forward.1} parent=0
    _
  %s7 = ssub.s32 1, %s5
  %s8 = scalar_select 0, %s7, %s5
  // Predicated region
  $region2: #{encoder_forward.1} parent=0 // pred_check
    _
  $region3: #{encoder_forward.1} parent=0 // pred_check_branch
    %10 = sbr.rel (0) target = $region5
  $region4: #{encoder_forward.1} parent=0 // pred_region
    _
  $region5: #{encoder_forward.1} parent=0 // pred_fallthru
    _
  // Predicated region
  $region6: #{encoder_forward.1} parent=0 // pred_check
    _
  $region7: #{encoder_forward.1} parent=0 // pred_check_branch
    %12 = sbr.rel (0) target = $region9
  $region8: #{encoder_forward.1} parent=0 // pred_region
    _
  $region9: #{encoder_forward.1} parent=0 // pred_fallthru
    _
  // Predicated region
  $region10: #{encoder_forward.1} parent=0 // pred_check
    _
  $region11: #{encoder_forward.1} parent=0 // pred_check_branch
    %14 = sbr.rel (0) target = $region13
  $region12: #{encoder_forward.1} parent=0 // pred_region
    _
  $region13: #{encoder_forward.1} parent=0 // pred_fallthru
    _
  // Predicated region
  $region14: #{encoder_forward.1} parent=0 // pred_check
    _
  $region15: #{encoder_forward.1} parent=0 // pred_check_branch
    %16 = sbr.rel (0) target = $region17
  $region16: #{encoder_forward.1} parent=0 // pred_region
    _
  $region17: #{encoder_forward.1} parent=0 // pred_fallthru
    _
  %v17 = vld [vmem:[%s0] sm:$0xf]
  %v18 = vld [vmem:[%s1] sm:$0xf]
  %v19 = vadd.f32 %v17, %v18
  %v22 = vunpack.c.l.s4 1983009808
  %v23 = vunpack.c.0.s8 %v22
  %v24 = vlaneseq
  %v25 = vshrl.u32 %v24, 7
  %v26 = vsub.s32 %v23, %v25
  %v27 = vrot.slane %v19, %v26
  %v28 = vcombine.high %v27, %v27
  %31 = vrot.lane.b32.xlu0 %v27, 8
  %v32 = vpop.permute.xlu0 %31
  %33 = vrot.lane.b32.xlu0 %v28, 8
  %v34 = vpop.permute.xlu0 %33
  %v35 = vlaneseq
  %v36 = vand.u32 %v35, 127
  %vm37 = vcmp.lt.s32.totalorder %v36, 8
  %v38 = vsel %vm37, %v32, %v34
  %v39 = vsel %vm37, %v34, %v32
  %v42 = vcombine.low %v39, %v38
  %v44 = vunpack.c.l.s4 1983009808
  %v45 = vunpack.c.0.s8 %v44
  %v46 = vlaneseq
  %v47 = vshrl.u32 %v46, 7
  %v48 = vsub.s32 %v45, %v47
  %v49 = vrot.slane %v42, %v48
  %v51 = vadd.f32 %v19, %v49
  %v54 = vunpack.c.l.s4 1983009808
  %v55 = vunpack.c.0.s8 %v54
  %v56 = vlaneseq
  %v57 = vshrl.u32 %v56, 7
  %v58 = vsub.s32 %v55, %v57
  %v59 = vrot.slane %v51, %v58
  %v60 = vcombine.high %v59, %v59
  %63 = vrot.lane.b32.xlu0 %v59, 16
  %v64 = vpop.permute.xlu0 %63
  %65 = vrot.lane.b32.xlu0 %v60, 16
  %v66 = vpop.permute.xlu0 %65
  %vm67 = vcmp.lt.s32.totalorder %v36, 16
  %v68 = vsel %vm67, %v64, %v66
  %v69 = vsel %vm67, %v66, %v64
  %v72 = vcombine.low %v69, %v68
  %v74 = vunpack.c.l.s4 1983009808
  %v75 = vunpack.c.0.s8 %v74
  %v76 = vlaneseq
  %v77 = vshrl.u32 %v76, 7
  %v78 = vsub.s32 %v75, %v77
  %v79 = vrot.slane %v72, %v78
  %v81 = vadd.f32 %v51, %v79
  %v84 = vunpack.c.l.s4 1983009808
  %v85 = vunpack.c.0.s8 %v84
  %v86 = vlaneseq
  %v87 = vshrl.u32 %v86, 7
  %v88 = vsub.s32 %v85, %v87
  %v89 = vrot.slane %v81, %v88
  %v90 = vcombine.high %v89, %v89
  %93 = vrot.lane.b32.xlu0 %v89, 32
  %v94 = vpop.permute.xlu0 %93
  %95 = vrot.lane.b32.xlu0 %v90, 32
  %v96 = vpop.permute.xlu0 %95
  %vm97 = vcmp.lt.s32.totalorder %v36, 32
  %v98 = vsel %vm97, %v94, %v96
  %v99 = vsel %vm97, %v96, %v94
  %v102 = vcombine.low %v99, %v98
  %v104 = vunpack.c.l.s4 1983009808
  %v105 = vunpack.c.0.s8 %v104
  %v106 = vlaneseq
  %v107 = vshrl.u32 %v106, 7
  %v108 = vsub.s32 %v105, %v107
  %v109 = vrot.slane %v102, %v108
  %v111 = vadd.f32 %v81, %v109
  %v114 = vunpack.c.l.s4 1983009808
  %v115 = vunpack.c.0.s8 %v114
  %v116 = vlaneseq
  %v117 = vshrl.u32 %v116, 7
  %v118 = vsub.s32 %v115, %v117
  %v119 = vrot.slane %v111, %v118
  %v120 = vcombine.high %v119, %v119
  %123 = vrot.lane.b32.xlu0 %v119, 64
  %v124 = vpop.permute.xlu0 %123
  %125 = vrot.lane.b32.xlu0 %v120, 64
  %v126 = vpop.permute.xlu0 %125
  %vm127 = vcmp.lt.s32.totalorder %v36, 64
  %v128 = vsel %vm127, %v124, %v126
  %v129 = vsel %vm127, %v126, %v124
  %v132 = vcombine.low %v129, %v128
  %v134 = vunpack.c.l.s4 1983009808
  %v135 = vunpack.c.0.s8 %v134
  %v136 = vlaneseq
  %v137 = vshrl.u32 %v136, 7
  %v138 = vsub.s32 %v135, %v137
  %v139 = vrot.slane %v132, %v138
  %v141 = vadd.f32 %v111, %v139
  %v144 = vunpack.c.l.s4 1983009808
  %v145 = vunpack.c.0.s8 %v144
  %v146 = vlaneseq
  %v147 = vshrl.u32 %v146, 7
  %v148 = vsub.s32 %v145, %v147
  %v149 = vrot.slane %v141, %v148
  %v150 = vcombine.high %v149, %v149
  %v151 = vcombine.low %v150, %v149
  %v153 = vunpack.c.l.s4 1983009808
  %v154 = vunpack.c.0.s8 %v153
  %v155 = vlaneseq
  %v156 = vshrl.u32 %v155, 7
  %v157 = vsub.s32 %v154, %v156
  %v158 = vrot.slane %v151, %v157
  %v160 = vadd.f32 %v141, %v158
  %v161 = vmul.f32 %v160, 0.03125
  %v162 = vsub.f32 %v19, %v161
  %v163 = vmul.f32 %v162, %v162
  %v166 = vunpack.c.l.s4 1983009808
  %v167 = vunpack.c.0.s8 %v166
  %v168 = vlaneseq
  %v169 = vshrl.u32 %v168, 7
  %v170 = vsub.s32 %v167, %v169
  %v171 = vrot.slane %v163, %v170
  %v172 = vcombine.high %v171, %v171
  %175 = vrot.lane.b32.xlu0 %v171, 8
  %v176 = vpop.permute.xlu0 %175
  %177 = vrot.lane.b32.xlu0 %v172, 8
  %v178 = vpop.permute.xlu0 %177
  %v179 = vsel %vm37, %v176, %v178
  %v180 = vsel %vm37, %v178, %v176
  %v183 = vcombine.low %v180, %v179
  %v185 = vunpack.c.l.s4 1983009808
  %v186 = vunpack.c.0.s8 %v185
  %v187 = vlaneseq
  %v188 = vshrl.u32 %v187, 7
  %v189 = vsub.s32 %v186, %v188
  %v190 = vrot.slane %v183, %v189
  %v192 = vadd.f32 %v163, %v190
  %v195 = vunpack.c.l.s4 1983009808
  %v196 = vunpack.c.0.s8 %v195
  %v197 = vlaneseq
  %v198 = vshrl.u32 %v197, 7
  %v199 = vsub.s32 %v196, %v198
  %v200 = vrot.slane %v192, %v199
  %v201 = vcombine.high %v200, %v200
  %204 = vrot.lane.b32.xlu0 %v200, 16
  %v205 = vpop.permute.xlu0 %204
  %206 = vrot.lane.b32.xlu0 %v201, 16
  %v207 = vpop.permute.xlu0 %206
  %v208 = vsel %vm67, %v205, %v207
  %v209 = vsel %vm67, %v207, %v205
  %v212 = vcombine.low %v209, %v208
  %v214 = vunpack.c.l.s4 1983009808
  %v215 = vunpack.c.0.s8 %v214
  %v216 = vlaneseq
  %v217 = vshrl.u32 %v216, 7
  %v218 = vsub.s32 %v215, %v217
  %v219 = vrot.slane %v212, %v218
  %v221 = vadd.f32 %v192, %v219
  %v224 = vunpack.c.l.s4 1983009808
  %v225 = vunpack.c.0.s8 %v224
  %v226 = vlaneseq
  %v227 = vshrl.u32 %v226, 7
  %v228 = vsub.s32 %v225, %v227
  %v229 = vrot.slane %v221, %v228
  %v230 = vcombine.high %v229, %v229
  %233 = vrot.lane.b32.xlu0 %v229, 32
  %v234 = vpop.permute.xlu0 %233
  %235 = vrot.lane.b32.xlu0 %v230, 32
  %v236 = vpop.permute.xlu0 %235
  %v237 = vsel %vm97, %v234, %v236
  %v238 = vsel %vm97, %v236, %v234
  %v241 = vcombine.low %v238, %v237
  %v243 = vunpack.c.l.s4 1983009808
  %v244 = vunpack.c.0.s8 %v243
  %v245 = vlaneseq
  %v246 = vshrl.u32 %v245, 7
  %v247 = vsub.s32 %v244, %v246
  %v248 = vrot.slane %v241, %v247
  %v250 = vadd.f32 %v221, %v248
  %v253 = vunpack.c.l.s4 1983009808
  %v254 = vunpack.c.0.s8 %v253
  %v255 = vlaneseq
  %v256 = vshrl.u32 %v255, 7
  %v257 = vsub.s32 %v254, %v256
  %v258 = vrot.slane %v250, %v257
  %v259 = vcombine.high %v258, %v258
  %262 = vrot.lane.b32.xlu0 %v258, 64
  %v263 = vpop.permute.xlu0 %262
  %264 = vrot.lane.b32.xlu0 %v259, 64
  %v265 = vpop.permute.xlu0 %264
  %v266 = vsel %vm127, %v263, %v265
  %v267 = vsel %vm127, %v265, %v263
  %v270 = vcombine.low %v267, %v266
  %v272 = vunpack.c.l.s4 1983009808
  %v273 = vunpack.c.0.s8 %v272
  %v274 = vlaneseq
  %v275 = vshrl.u32 %v274, 7
  %v276 = vsub.s32 %v273, %v275
  %v277 = vrot.slane %v270, %v276
  %v279 = vadd.f32 %v250, %v277
  %v282 = vunpack.c.l.s4 1983009808
  %v283 = vunpack.c.0.s8 %v282
  %v284 = vlaneseq
  %v285 = vshrl.u32 %v284, 7
  %v286 = vsub.s32 %v283, %v285
  %v287 = vrot.slane %v279, %v286
  %v288 = vcombine.high %v287, %v287
  %v289 = vcombine.low %v288, %v287
  %v291 = vunpack.c.l.s4 1983009808
  %v292 = vunpack.c.0.s8 %v291
  %v293 = vlaneseq
  %v294 = vshrl.u32 %v293, 7
  %v295 = vsub.s32 %v292, %v294
  %v296 = vrot.slane %v289, %v295
  %v298 = vadd.f32 %v279, %v296
  %v299 = vmul.f32 %v298, 0.03125
  %v300 = vadd.f32 %v299, 1e-05
  %v301 = vrsqrt.pop %v300
  %v302 = vmul.f32 %v162, %v301
  %v305 = vunpack.c.l.s4 1983009808
  %v306 = vunpack.c.0.s8 %v305
  %v307 = vlaneseq
  %v308 = vshrl.u32 %v307, 7
  %v309 = vsub.s32 %v306, %v308
  %v310 = vrot.slane %v302, %v309
  %v311 = vcombine.high %v310, %v310
  %v314 = vpack.c.bf16 %v310, %v310
  %v315 = vpack.c.bf16 %v311, %v311
  %v316 = vld [vmem:[%s2] sm:$0xff]
  %v317 = vld [vmem:[%s2 + $0x8] sm:$0xff]
  %v318 = vld [vmem:[%s2 + $0x10] sm:$0xff]
  %v319 = vld [vmem:[%s2 + $0x18] sm:$0xff]
  %v320 = vld [vmem:[%s2 + $0x20] sm:$0xff]
  %v321 = vld [vmem:[%s2 + $0x28] sm:$0xff]
  %v322 = vld [vmem:[%s2 + $0x30] sm:$0xff]
  %v323 = vld [vmem:[%s2 + $0x38] sm:$0xff]
  %v324 = vld [vmem:[%s2 + $0x40] sm:$0xff]
  %v325 = vld [vmem:[%s2 + $0x48] sm:$0xff]
  %v326 = vld [vmem:[%s2 + $0x50] sm:$0xff]
  %v327 = vld [vmem:[%s2 + $0x58] sm:$0xff]
  %v328 = vld [vmem:[%s2 + $0x60] sm:$0xff]
  %v329 = vld [vmem:[%s2 + $0x68] sm:$0xff]
  %v330 = vld [vmem:[%s2 + $0x70] sm:$0xff]
  %v331 = vld [vmem:[%s2 + $0x78] sm:$0xff]
  %v332 = vld [vmem:[%s2 + $0x80] sm:$0xff]
  %v333 = vld [vmem:[%s2 + $0x88] sm:$0xff]
  %v334 = vld [vmem:[%s2 + $0x90] sm:$0xff]
  %v335 = vld [vmem:[%s2 + $0x98] sm:$0xff]
  %v336 = vld [vmem:[%s2 + $0xa0] sm:$0xff]
  %v337 = vld [vmem:[%s2 + $0xa8] sm:$0xff]
  %v338 = vld [vmem:[%s2 + $0xb0] sm:$0xff]
  %v339 = vld [vmem:[%s2 + $0xb8] sm:$0xff]
  %v340 = vld [vmem:[%s2 + $0xc0] sm:$0xff]
  %v341 = vld [vmem:[%s2 + $0xc8] sm:$0xff]
  %v342 = vld [vmem:[%s2 + $0xd0] sm:$0xff]
  %v343 = vld [vmem:[%s2 + $0xd8] sm:$0xff]
  %v344 = vld [vmem:[%s2 + $0xe0] sm:$0xff]
  %v345 = vld [vmem:[%s2 + $0xe8] sm:$0xff]
  %v346 = vld [vmem:[%s2 + $0xf0] sm:$0xff]
  %v347 = vld [vmem:[%s2 + $0xf8] sm:$0xff]
  %v380 = vunpack.c.l.b16 %v316
  %v381 = vunpack.c.h.b16 %v316
  %v382 = vunpack.c.l.b16 %v317
  %v383 = vunpack.c.h.b16 %v317
  %v384 = vunpack.c.l.b16 %v318
  %v385 = vunpack.c.h.b16 %v318
  %v386 = vunpack.c.l.b16 %v319
  %v387 = vunpack.c.h.b16 %v319
  %v388 = vunpack.c.l.b16 %v320
  %v389 = vunpack.c.h.b16 %v320
  %v390 = vunpack.c.l.b16 %v321
  %v391 = vunpack.c.h.b16 %v321
  %v392 = vunpack.c.l.b16 %v322
  %v393 = vunpack.c.h.b16 %v322
  %v394 = vunpack.c.l.b16 %v323
  %v395 = vunpack.c.h.b16 %v323
  %v396 = vunpack.c.l.b16 %v324
  %v397 = vunpack.c.h.b16 %v324
  %v398 = vunpack.c.l.b16 %v325
  %v399 = vunpack.c.h.b16 %v325
  %v400 = vunpack.c.l.b16 %v326
  %v401 = vunpack.c.h.b16 %v326
  %v402 = vunpack.c.l.b16 %v327
  %v403 = vunpack.c.h.b16 %v327
  %v404 = vunpack.c.l.b16 %v328
  %v405 = vunpack.c.h.b16 %v328
  %v406 = vunpack.c.l.b16 %v329
  %v407 = vunpack.c.h.b16 %v329
  %v408 = vunpack.c.l.b16 %v330
  %v409 = vunpack.c.h.b16 %v330
  %v410 = vunpack.c.l.b16 %v331
  %v411 = vunpack.c.h.b16 %v331
  %v412 = vunpack.c.l.b16 %v332
  %v413 = vunpack.c.h.b16 %v332
  %v414 = vunpack.c.l.b16 %v333
  %v415 = vunpack.c.h.b16 %v333
  %v416 = vunpack.c.l.b16 %v334
  %v417 = vunpack.c.h.b16 %v334
  %v418 = vunpack.c.l.b16 %v335
  %v419 = vunpack.c.h.b16 %v335
  %v420 = vunpack.c.l.b16 %v336
  %v421 = vunpack.c.h.b16 %v336
  %v422 = vunpack.c.l.b16 %v337
  %v423 = vunpack.c.h.b16 %v337
  %v424 = vunpack.c.l.b16 %v338
  %v425 = vunpack.c.h.b16 %v338
  %v426 = vunpack.c.l.b16 %v339
  %v427 = vunpack.c.h.b16 %v339
  %v428 = vunpack.c.l.b16 %v340
  %v429 = vunpack.c.h.b16 %v340
  %v430 = vunpack.c.l.b16 %v341
  %v431 = vunpack.c.h.b16 %v341
  %v432 = vunpack.c.l.b16 %v342
  %v433 = vunpack.c.h.b16 %v342
  %v434 = vunpack.c.l.b16 %v343
  %v435 = vunpack.c.h.b16 %v343
  %v436 = vunpack.c.l.b16 %v344
  %v437 = vunpack.c.h.b16 %v344
  %v438 = vunpack.c.l.b16 %v345
  %v439 = vunpack.c.h.b16 %v345
  %v440 = vunpack.c.l.b16 %v346
  %v441 = vunpack.c.h.b16 %v346
  %v442 = vunpack.c.l.b16 %v347
  %v443 = vunpack.c.h.b16 %v347
  %v444 = vpack.c.b16 %v382, %v380
  %v445 = vpack.c.b16 %v383, %v381
  %v446 = vpack.c.b16 %v386, %v384
  %v447 = vpack.c.b16 %v387, %v385
  %v448 = vpack.c.b16 %v390, %v388
  %v449 = vpack.c.b16 %v391, %v389
  %v450 = vpack.c.b16 %v394, %v392
  %v451 = vpack.c.b16 %v395, %v393
  %v452 = vpack.c.b16 %v398, %v396
  %v453 = vpack.c.b16 %v399, %v397
  %v454 = vpack.c.b16 %v402, %v400
  %v455 = vpack.c.b16 %v403, %v401
  %v456 = vpack.c.b16 %v406, %v404
  %v457 = vpack.c.b16 %v407, %v405
  %v458 = vpack.c.b16 %v410, %v408
  %v459 = vpack.c.b16 %v411, %v409
  %v460 = vpack.c.b16 %v414, %v412
  %v461 = vpack.c.b16 %v415, %v413
  %v462 = vpack.c.b16 %v418, %v416
  %v463 = vpack.c.b16 %v419, %v417
  %v464 = vpack.c.b16 %v422, %v420
  %v465 = vpack.c.b16 %v423, %v421
  %v466 = vpack.c.b16 %v426, %v424
  %v467 = vpack.c.b16 %v427, %v425
  %v468 = vpack.c.b16 %v430, %v428
  %v469 = vpack.c.b16 %v431, %v429
  %v470 = vpack.c.b16 %v434, %v432
  %v471 = vpack.c.b16 %v435, %v433
  %v472 = vpack.c.b16 %v438, %v436
  %v473 = vpack.c.b16 %v439, %v437
  %v474 = vpack.c.b16 %v442, %v440
  %v475 = vpack.c.b16 %v443, %v441
  %508 = vmatprep.subr.bf16.mxu0 %v445
  %509 = vmatpush1.bf16.msra.mxu0 %v444
  %510 = vmatprep.subr.bf16.mxu0 %v447
  %511 = vmatpush1.bf16.msra.mxu0 %v446
  %512 = vmatprep.subr.bf16.mxu0 %v449
  %513 = vmatpush1.bf16.msra.mxu0 %v448
  %514 = vmatprep.subr.bf16.mxu0 %v451
  %515 = vmatpush1.bf16.msra.mxu0 %v450
  %516 = vmatprep.subr.bf16.mxu0 %v453
  %517 = vmatpush1.bf16.msra.mxu0 %v452
  %518 = vmatprep.subr.bf16.mxu0 %v455
  %519 = vmatpush1.bf16.msra.mxu0 %v454
  %520 = vmatprep.subr.bf16.mxu0 %v457
  %521 = vmatpush1.bf16.msra.mxu0 %v456
  %522 = vmatprep.subr.bf16.mxu0 %v459
  %523 = vmatpush1.bf16.msra.mxu0 %v458
  %524 = vmatprep.subr.bf16.mxu0 %v461
  %525 = vmatpush1.bf16.msra.mxu0 %v460
  %526 = vmatprep.subr.bf16.mxu0 %v463
  %527 = vmatpush1.bf16.msra.mxu0 %v462
  %528 = vmatprep.subr.bf16.mxu0 %v465
  %529 = vmatpush1.bf16.msra.mxu0 %v464
  %530 = vmatprep.subr.bf16.mxu0 %v467
  %531 = vmatpush1.bf16.msra.mxu0 %v466
  %532 = vmatprep.subr.bf16.mxu0 %v469
  %533 = vmatpush1.bf16.msra.mxu0 %v468
  %534 = vmatprep.subr.bf16.mxu0 %v471
  %535 = vmatpush1.bf16.msra.mxu0 %v470
  %536 = vmatprep.subr.bf16.mxu0 %v473
  %537 = vmatpush1.bf16.msra.mxu0 %v472
  %538 = vmatprep.subr.bf16.mxu0 %v475
  %539 = vmatpush1.bf16.msra.mxu0 %v474
  %540 = vmatprep.mubr.bf16.mxu0 %v315
  %541 = vmatmul.mubr.bf16.gmra.mrb[0].mxu0 %v314
  %v542 = vpop.f32.mrb[0].mxu0
  %v543 = vadd.f32 0.0, %v542
  %v544 = vpop.f32.mrb[0].mxu0
  %v545 = vadd.f32 0.0, %v544
  %v546 = vpop.f32.mrb[0].mxu0
  %v547 = vpop.f32.mrb[0].mxu0
  %548 = vdwg.mxu0
  %v551 = vcombine.low %v543, %v545
  %v553 = vunpack.c.l.s4 1983009808
  %v554 = vunpack.c.0.s8 %v553
  %v555 = vlaneseq
  %v556 = vshrl.u32 %v555, 7
  %v557 = vsub.s32 %v554, %v556
  %v558 = vrot.slane %v551, %v557
  %v560 = vadd.f32 %v19, %v558
  %v561 = vld [vmem:[%s3] sm:$0x3]
  %v563 = vlaneseq
  %v564 = vshrl.u32 %v563, 7
  %v565 = vsub.s32 0, %v564
  %v566 = vrot.slane %v561, %v565
  %v567 = vlaneseq
  %v568 = vshrl.u32 %v567, 7
  %v569 = vsub.s32 1, %v568
  %v570 = vrot.slane %v561, %v569
  %v571 = vcombine.low %v566, %v570
  %v573 = vunpack.c.l.s4 1983009808
  %v574 = vunpack.c.0.s8 %v573
  %v575 = vlaneseq
  %v576 = vshrl.u32 %v575, 7
  %v577 = vsub.s32 %v574, %v576
  %v578 = vrot.slane %v571, %v577
  %v580 = vadd.f32 %v560, %v578
  %581 = vst [vmem:[%s4] sm:$0xf] %v580
  // Predicated region
  $region18: #{encoder_forward.1} parent=0 // pred_check
    _
  $region19: #{encoder_forward.1} parent=0 // pred_check_branch
    %583 = sbr.rel (0) target = $region21
  $region20: #{encoder_forward.1} parent=0 // pred_region
    _
  $region21: #{encoder_forward.1} parent=0 // pred_fallthru
    _
  // Predicated region
  $region22: #{encoder_forward.1} parent=0 // pred_check
    _
  $region23: #{encoder_forward.1} parent=0 // pred_check_branch
    %585 = sbr.rel (0) target = $region25
  $region24: #{encoder_forward.1} parent=0 // pred_region
    _
  $region25: #{encoder_forward.1} parent=0 // pred_fallthru
    _

</llo_original>
